<compile_context>
chip_gen: v6e
topology: v6e:2x2x1
jax: 0.10.0
libtpu: 0.0.40
codegen_flags: <defaults>
</compile_context>

<pallas_src>
import jax
import jax.numpy as jnp
from jax import lax
from jax.experimental import pallas as pl
from jax.experimental.pallas import tpu as pltpu

_TH_MAX = 32 * 1024              # spatial-chunk cap for the streaming kernels
_SOBEL_BLOCK_BYTES = 4 << 20     # per-input-buffer budget for the Sobel kernel
_VMEM_LIMIT = 48 * 1024 * 1024   # explicit scoped-VMEM limit (<= v7x's 64 MiB)

_STREAM_PARAMS = pltpu.CompilerParams(
    dimension_semantics=("parallel", "arbitrary"),   # B parallel, HW-chunk reduction
    vmem_limit_bytes=_VMEM_LIMIT)
_PARALLEL_1D = pltpu.CompilerParams(dimension_semantics=("parallel",))


def _choose_tile(n, cap):
    """Largest multiple of 128 dividing n that is <= cap; n itself otherwise."""
    if n % 128 == 0 and n > cap:
        t = (cap // 128) * 128
        while t >= 128:
            if n % t == 0:
                return t
            t -= 128
    return n


# ----------------------------------------------------------------------------
# Pallas kernel 1: Sobel feature gradient (separable stencil, rsqrt normalize)
# ----------------------------------------------------------------------------
def _sobel_kernel(img_ref, dx_ref, dy_ref):
    img = img_ref[...]                      # (NP, H+2, W+2), replicate-padded
    Hp, Wp = img.shape[1], img.shape[2]
    H, W = Hp - 2, Wp - 2
    top = img[:, 0:H, :]
    mid = img[:, 1:H + 1, :]
    bot = img[:, 2:H + 2, :]
    vsum = top + 2.0 * mid + bot            # vertical [1,2,1] smooth (for dx)
    vdif = bot - top                        # vertical [-1,0,1]  diff  (for dy)
    dx = vsum[:, :, 2:W + 2] - vsum[:, :, 0:W]
    dy = vdif[:, :, 0:W] + 2.0 * vdif[:, :, 1:W + 1] + vdif[:, :, 2:W + 2]
    inv = lax.rsqrt(dx * dx + dy * dy + 1e-8)   # EUP slot (no VPU divisions)
    dx_ref[...] = dx * inv
    dy_ref[...] = dy * inv


def feature_gradient(img):
    """Normalized Sobel gradient; matches torch conv2d with replicate padding."""
    B, C, H, W = img.shape
    N = B * C
    plane_bytes = (H + 2) * (W + 2) * img.dtype.itemsize
    NP = int(max(1, min(N, _SOBEL_BLOCK_BYTES // plane_bytes)))
    Npad = ((N + NP - 1) // NP) * NP
    img_pad = jnp.pad(img.reshape(N, H, W),
                      ((0, Npad - N), (1, 1), (1, 1)), mode="edge")
    dx, dy = pl.pallas_call(
        _sobel_kernel,
        out_shape=(jax.ShapeDtypeStruct((Npad, H, W), img.dtype),
                   jax.ShapeDtypeStruct((Npad, H, W), img.dtype)),
        grid=(Npad // NP,),
        in_specs=[pl.BlockSpec((NP, H + 2, W + 2), lambda n: (n, 0, 0))],
        out_specs=(pl.BlockSpec((NP, H, W), lambda n: (n, 0, 0)),
                   pl.BlockSpec((NP, H, W), lambda n: (n, 0, 0))),
        compiler_params=_PARALLEL_1D,
    )(img_pad)
    return dx[:N].reshape(B, C, H, W), dy[:N].reshape(B, C, H, W)


# ----------------------------------------------------------------------------
# Pallas kernel 2 (fused, HW-tiled): M-estimator weights + JtWJ + JtWr.
#   J is rebuilt on the fly per chunk:  J[p, c, s] = jfx[c,s]*jxp[p,s]
#                                                  + jfy[c,s]*jyp[p,s]
#   w = 1/(1 + r^2);  JtWJ = sum_{c,s} w J J^T;  JtWr = sum_{c,s} J w r
# ----------------------------------------------------------------------------
def _normal_eq_kernel(jfx_ref, jfy_ref, jxp_ref, jyp_ref, r_ref,
                      w_ref, jtwj_ref, jtwr_ref, acc_jj, acc_jr):
    m = pl.program_id(1)

    @pl.when(m == 0)
    def _():
        acc_jj[...] = jnp.zeros_like(acc_jj)
        acc_jr[...] = jnp.zeros_like(acc_jr)

    jfx = jfx_ref[0]                        # (C, TH)
    jfy = jfy_ref[0]                        # (C, TH)
    jxp = jxp_ref[0]                        # (6, TH)
    jyp = jyp_ref[0]                        # (6, TH)
    r = r_ref[0]                            # (C, TH)

    # TODO(synk): original mEstimator is a learned CNN on (residual, x0, x1,
    #   wPrior); analytic Cauchy weights are the stand-in.  Exact reciprocal
    #   (memory-bound kernel -> free) since w feeds every JtWJ / JtWr.
    w = 1.0 / (1.0 + r * r)
    w_ref[0] = w

    C = r.shape[0]
    gram = jnp.zeros((6, 6), jnp.float32)
    jtwr = jnp.zeros((6, 1), jnp.float32)
    for c in range(C):                      # C is small and static
        j_c = jfx[c:c + 1, :] * jxp + jfy[c:c + 1, :] * jyp     # (6, TH)
        jw_c = j_c * w[c:c + 1, :]
        # A.B^T: lane-axis contraction on both operands -> MXU transposed-RHS
        # path; no standalone XLU transpose of the (6, TH) tile.
        gram = gram + lax.dot_general(jw_c, j_c, (((1,), (1,)), ((), ())),
                                      preferred_element_type=jnp.float32)
        jtwr = jtwr + jnp.sum(jw_c * r[c:c + 1, :], axis=1, keepdims=True)

    acc_jj[...] += gram
    acc_jr[...] += jtwr
    jtwj_ref[0] = acc_jj[...]
    jtwr_ref[0] = acc_jr[...]


def weights_and_normal_eq(jfx, jfy, jxp, jyp, r):
    B, C, HW = jfx.shape
    TH = _choose_tile(HW, _TH_MAX)
    spec_c = pl.BlockSpec((1, C, TH), lambda b, m: (b, 0, m))
    spec_p = pl.BlockSpec((1, 6, TH), lambda b, m: (b, 0, m))
    return pl.pallas_call(
        _normal_eq_kernel,
        out_shape=(jax.ShapeDtypeStruct((B, C, HW), jnp.float32),
                   jax.ShapeDtypeStruct((B, 6, 6), jnp.float32),
                   jax.ShapeDtypeStruct((B, 6, 1), jnp.float32)),
        grid=(B, HW // TH),
        in_specs=[spec_c, spec_c, spec_p, spec_p, spec_c],
        out_specs=(spec_c,
                   pl.BlockSpec((1, 6, 6), lambda b, m: (b, 0, 0)),
                   pl.BlockSpec((1, 6, 1), lambda b, m: (b, 0, 0))),
        scratch_shapes=[pltpu.VMEM((6, 6), jnp.float32),
                        pltpu.VMEM((6, 1), jnp.float32)],
        compiler_params=_STREAM_PARAMS,
    )(jfx, jfy, jxp, jyp, r)


# ----------------------------------------------------------------------------
# Pallas kernel 3 (HW-tiled): per-iteration JtWr = J^T W r, J rebuilt in-kernel
# ----------------------------------------------------------------------------
def _jtwr_kernel(jfx_ref, jfy_ref, jxp_ref, jyp_ref, w_ref, r_ref,
                 jtwr_ref, acc_jr):
    m = pl.program_id(1)

    @pl.when(m == 0)
    def _():
        acc_jr[...] = jnp.zeros_like(acc_jr)

    jfx = jfx_ref[0]                        # (C, TH)
    jfy = jfy_ref[0]
    jxp = jxp_ref[0]                        # (6, TH)
    jyp = jyp_ref[0]
    wr = w_ref[0] * r_ref[0]                # (C, TH)

    C = wr.shape[0]
    jtwr = jnp.zeros((6, 1), jnp.float32)
    for c in range(C):
        j_c = jfx[c:c + 1, :] * jxp + jfy[c:c + 1, :] * jyp     # (6, TH)
        jtwr = jtwr + jnp.sum(j_c * wr[c:c + 1, :], axis=1, keepdims=True)

    acc_jr[...] += jtwr
    jtwr_ref[0] = acc_jr[...]


def compute_jtwr(jfx, jfy, jxp, jyp, w, r):
    B, C, HW = jfx.shape
    TH = _choose_tile(HW, _TH_MAX)
    spec_c = pl.BlockSpec((1, C, TH), lambda b, m: (b, 0, m))
    spec_p = pl.BlockSpec((1, 6, TH), lambda b, m: (b, 0, m))
    return pl.pallas_call(
        _jtwr_kernel,
        out_shape=jax.ShapeDtypeStruct((B, 6, 1), jnp.float32),
        grid=(B, HW // TH),
        in_specs=[spec_c, spec_c, spec_p, spec_p, spec_c, spec_c],
        out_specs=pl.BlockSpec((1, 6, 1), lambda b, m: (b, 0, 0)),
        scratch_shapes=[pltpu.VMEM((6, 1), jnp.float32)],
        compiler_params=_STREAM_PARAMS,
    )(jfx, jfy, jxp, jyp, w, r)


# ----------------------------------------------------------------------------
# Geometry helpers (plain JAX glue: grid generation, warping, occlusion)
# ----------------------------------------------------------------------------
def generate_xy_grid(B, H, W, K):
    fx, fy, cx, cy = K[:, 0], K[:, 1], K[:, 2], K[:, 3]
    u = jnp.arange(W, dtype=jnp.float32)
    v = jnp.arange(H, dtype=jnp.float32)
    uu, vv = jnp.meshgrid(u, v)             # (H, W)
    px = (uu[None] - cx[:, None, None]) / fx[:, None, None]
    py = (vv[None] - cy[:, None, None]) / fy[:, None, None]
    return px[:, None], py[:, None]         # (B, 1, H, W)


def batch_warp_inverse_depth(px, py, invD, pose, K):
    R, t = pose                             # (B,3,3), (B,3,1)
    B, _, H, W = px.shape
    ones = jnp.ones_like(px)
    xy1 = jnp.concatenate([px, py, ones], axis=1).reshape(B, 3, H * W)
    warped = R @ xy1 + t * invD.reshape(B, 1, H * W)
    x_, y_, s_ = warped[:, 0], warped[:, 1], warped[:, 2]
    fx, fy, cx, cy = K[:, 0:1], K[:, 1:2], K[:, 2:3], K[:, 3:4]
    u = (x_ / s_) * fx + cx
    v = (y_ / s_) * fy + cy
    inv_z = invD / s_.reshape(B, 1, H, W)
    return u.reshape(B, 1, H, W), v.reshape(B, 1, H, W), inv_z


def warp_features(F, u, v):
    """Bilinear sampling with border padding (grid_sample-style gather)."""
    # TODO(synk): if this XLA gather dominates at production sizes, replace
    #   with a Pallas scalar-prefetched gather.
    B, C, H, W = F.shape
    u = jnp.clip(u.reshape(B, H * W), 0.0, W - 1.0)
    v = jnp.clip(v.reshape(B, H * W), 0.0, H - 1.0)
    u0 = jnp.floor(u); v0 = jnp.floor(v)
    u1 = jnp.clip(u0 + 1.0, 0.0, W - 1.0)
    v1 = jnp.clip(v0 + 1.0, 0.0, H - 1.0)
    wu = u - u0; wv = v - v0
    Fflat = F.reshape(B, C, H * W)

    def gather(vi, ui):
        idx = (vi * W + ui).astype(jnp.int32)
        idx = jnp.broadcast_to(idx[:, None, :], (B, C, H * W))
        return jnp.take_along_axis(Fflat, idx, axis=2)

    f00 = gather(v0, u0); f01 = gather(v0, u1)
    f10 = gather(v1, u0); f11 = gather(v1, u1)
    wu = wu[:, None, :]; wv = wv[:, None, :]
    out = (f00 * (1 - wu) * (1 - wv) + f01 * wu * (1 - wv)
           + f10 * (1 - wu) * wv + f11 * wu * wv)
    return out.reshape(B, C, H, W)


def check_occ(inv_z_buffer, inv_z_ref, u, v, thres=0.1):
    B, _, H, W = u.shape
    inv_z_warped = warp_features(inv_z_ref, u, v)
    inlier = inv_z_buffer > (inv_z_warped - thres)
    inviews = inlier & (u > 0) & (u < W) & (v > 0) & (v < H)
    return jnp.logical_not(inviews)         # (B, 1, H, W)


def compute_warped_residual(pose, invD0, invD1, x0, x1, px, py, K):
    u, v, inv_z = batch_warp_inverse_depth(px, py, invD0, pose, K)
    x1_1to0 = warp_features(x1, u, v)
    occ = check_occ(inv_z, invD1, u, v)
    residuals = x1_1to0 - x0
    residuals = jnp.where(occ, 0.001, residuals)
    return residuals, occ


def compute_jacobian_warping(p_invdepth, K, px, py):
    """Warping Jacobians stacked lane-dense: (B, 6, H*W) each."""
    B, C, H, W = p_invdepth.shape
    x = px.reshape(B, 1, -1)
    y = py.reshape(B, 1, -1)
    invd = p_invdepth.reshape(B, 1, -1)
    xy = x * y
    O = jnp.zeros_like(x)
    fx = K[:, 0].reshape(B, 1, 1)
    fy = K[:, 1].reshape(B, 1, 1)
    dx_dp = jnp.concatenate([-xy, 1.0 + x ** 2, -y, invd, O, -invd * x], axis=1)
    dy_dp = jnp.concatenate([-1.0 - y ** 2, xy, x, O, invd, -invd * y], axis=1)
    return dx_dp * fx, dy_dp * fy


# ----------------------------------------------------------------------------
# SE(3) update / solver stand-in
# ----------------------------------------------------------------------------
def _skew(w):
    zero = jnp.zeros_like(w[:, 0])
    return jnp.stack([
        jnp.stack([zero, -w[:, 2], w[:, 1]], axis=-1),
        jnp.stack([w[:, 2], zero, -w[:, 0]], axis=-1),
        jnp.stack([-w[:, 1], w[:, 0], zero], axis=-1)], axis=1)


def _so3_exp(w):
    theta = jnp.linalg.norm(w, axis=1, keepdims=True)
    theta = jnp.maximum(theta, 1e-12)
    k = w / theta
    Kx = _skew(k)
    st = jnp.sin(theta)[:, :, None]
    ct = jnp.cos(theta)[:, :, None]
    I = jnp.eye(3, dtype=w.dtype)[None]
    return I + st * Kx + (1.0 - ct) * (Kx @ Kx)


def direct_solver(JtWJ, JtWr, pose):
    # TODO(synk): original directSolver is a learned trust-region network;
    #   damped Gauss-Newton inverse-compositional update used as stand-in.
    Hm = JtWJ + 1e-6 * jnp.eye(6, dtype=JtWJ.dtype)[None]
    xi = jnp.linalg.solve(Hm, -JtWr)                           # (B, 6, 1)
    dR = _so3_exp(-xi[:, 3:6, 0])                              # (B, 3, 3)
    dt = -(dR @ xi[:, 0:3])                                    # (B, 3, 1)
    R, t = pose
    return (R @ dR, R @ dt + t)


# ----------------------------------------------------------------------------
# TrustRegionBase.forward
# ----------------------------------------------------------------------------
def precompute_jacobian_components(invD, x, px, py, K):
    """Components of the image Jacobian (eq. 13); J itself is rebuilt in-kernel."""
    B, C, H, W = x.shape
    Jf_x, Jf_y = feature_gradient(x)                           # (B, C, H, W)
    Jx_p, Jy_p = compute_jacobian_warping(invD, K, px, py)     # (B, 6, HW)
    return (Jf_x.reshape(B, C, H * W), Jf_y.reshape(B, C, H * W), Jx_p, Jy_p)


def trust_region_forward(pose, x0, x1, invD0, invD1, K, wPrior=None, max_iter=3):
    B, C, H, W = x0.shape
    HW = H * W
    px, py = generate_xy_grid(B, H, W, K)

    jfx, jfy, jxp, jyp = precompute_jacobian_components(invD0, x0, px, py, K)
    residuals, occ = compute_warped_residual(pose, invD0, invD1, x0, x1, px, py, K)

    # Fused streaming kernel: M-estimator weights + JtWJ + first-iteration JtWr.
    w_flat, JtWJ, JtWr = weights_and_normal_eq(
        jfx, jfy, jxp, jyp, residuals.reshape(B, C, HW))
    weights = w_flat.reshape(B, C, H, W)

    for it in range(max_iter):
        pose = direct_solver(JtWJ, JtWr, pose)
        residuals, occ = compute_warped_residual(pose, invD0, invD1, x0, x1, px, py, K)
        if it + 1 < max_iter:   # JtWr not consumed after the final solve
            JtWr = compute_jtwr(jfx, jfy, jxp, jyp, w_flat,
                                residuals.reshape(B, C, HW))

    return pose, weights


# ----------------------------------------------------------------------------
if __name__ == "__main__":
    key = jax.random.PRNGKey(0)
    k1, k2, k3, k4, k5 = jax.random.split(key, 5)

    B, C, H, W = 2, 4, 16, 16
    x0 = jax.random.normal(k1, (B, C, H, W), jnp.float32)
    x1 = jax.random.normal(k2, (B, C, H, W), jnp.float32)
    invD0 = jax.random.uniform(k3, (B, 1, H, W), jnp.float32, 0.2, 1.0)
    invD1 = jax.random.uniform(k4, (B, 1, H, W), jnp.float32, 0.2, 1.0)
    K = jnp.tile(jnp.array([[10.0, 10.0, (W - 1) / 2.0, (H - 1) / 2.0]],
                           jnp.float32), (B, 1))               # [fx, fy, cx, cy]

    R0 = jnp.tile(jnp.eye(3, dtype=jnp.float32)[None], (B, 1, 1))
    t0 = 0.01 * jax.random.normal(k5, (B, 3, 1), jnp.float32)
    pose = (R0, t0)

    (R_out, t_out), weights = trust_region_forward(
        pose, x0, x1, invD0, invD1, K, wPrior=None, max_iter=3)

    jax.block_until_ready(R_out)
    jax.block_until_ready(t_out)
    jax.block_until_ready(weights)
    print("KERNEL_OK")
</pallas_src>

<mosaic_0001>
module attributes {stable_mosaic.version = 11 : i64} {
  func.func @_sobel_kernel(%arg0: i32, %arg1: memref<8x18x18xf32, #tpu.memory_space<vmem>>, %arg2: memref<8x16x16xf32, #tpu.memory_space<vmem>>, %arg3: memref<8x16x16xf32, #tpu.memory_space<vmem>>) attributes {dimension_semantics = [#tpu.dimension_semantics<parallel>], iteration_bounds = array<i64: 1>, scalar_prefetch = 0 : i64, scratch_operands = 0 : i64, tpu.core_type = #tpu.core_type<tc>, window_params = [{transform_indices = @transform_0, window_bounds = array<i64: 8, 18, 18>}, {transform_indices = @transform_1, window_bounds = array<i64: 8, 16, 16>}, {transform_indices = @transform_2, window_bounds = array<i64: 8, 16, 16>}]} {
    %c0 = arith.constant 0 : index
    %c0_0 = arith.constant 0 : index
    %c0_1 = arith.constant 0 : index
    %0 = vector.load %arg1[%c0, %c0_0, %c0_1] : memref<8x18x18xf32, #tpu.memory_space<vmem>>, vector<8x18x18xf32>
    %1 = vector.extract_strided_slice %0 {offsets = [0, 0, 0], sizes = [8, 16, 18], strides = [1, 1, 1]} : vector<8x18x18xf32> to vector<8x16x18xf32>
    %2 = vector.extract_strided_slice %0 {offsets = [0, 1, 0], sizes = [8, 16, 18], strides = [1, 1, 1]} : vector<8x18x18xf32> to vector<8x16x18xf32>
    %3 = vector.extract_strided_slice %0 {offsets = [0, 2, 0], sizes = [8, 16, 18], strides = [1, 1, 1]} : vector<8x18x18xf32> to vector<8x16x18xf32>
    %cst = arith.constant 2.000000e+00 : f32
    %4 = vector.broadcast %cst : f32 to vector<8x16x18xf32>
    %5 = arith.mulf %4, %2 : vector<8x16x18xf32>
    %6 = arith.addf %1, %5 : vector<8x16x18xf32>
    %7 = arith.addf %6, %3 : vector<8x16x18xf32>
    %8 = arith.subf %3, %1 : vector<8x16x18xf32>
    %9 = vector.extract_strided_slice %7 {offsets = [0, 0, 2], sizes = [8, 16, 16], strides = [1, 1, 1]} : vector<8x16x18xf32> to vector<8x16x16xf32>
    %10 = vector.extract_strided_slice %7 {offsets = [0, 0, 0], sizes = [8, 16, 16], strides = [1, 1, 1]} : vector<8x16x18xf32> to vector<8x16x16xf32>
    %11 = arith.subf %9, %10 : vector<8x16x16xf32>
    %12 = vector.extract_strided_slice %8 {offsets = [0, 0, 0], sizes = [8, 16, 16], strides = [1, 1, 1]} : vector<8x16x18xf32> to vector<8x16x16xf32>
    %13 = vector.extract_strided_slice %8 {offsets = [0, 0, 1], sizes = [8, 16, 16], strides = [1, 1, 1]} : vector<8x16x18xf32> to vector<8x16x16xf32>
    %cst_2 = arith.constant 2.000000e+00 : f32
    %14 = vector.broadcast %cst_2 : f32 to vector<8x16x16xf32>
    %15 = arith.mulf %14, %13 : vector<8x16x16xf32>
    %16 = arith.addf %12, %15 : vector<8x16x16xf32>
    %17 = vector.extract_strided_slice %8 {offsets = [0, 0, 2], sizes = [8, 16, 16], strides = [1, 1, 1]} : vector<8x16x18xf32> to vector<8x16x16xf32>
    %18 = arith.addf %16, %17 : vector<8x16x16xf32>
    %19 = arith.mulf %11, %11 : vector<8x16x16xf32>
    %20 = arith.mulf %18, %18 : vector<8x16x16xf32>
    %21 = arith.addf %19, %20 : vector<8x16x16xf32>
    %cst_3 = arith.constant 9.99999993E-9 : f32
    %22 = vector.broadcast %cst_3 : f32 to vector<8x16x16xf32>
    %23 = arith.addf %21, %22 : vector<8x16x16xf32>
    %24 = math.rsqrt %23 : vector<8x16x16xf32>
    %25 = arith.mulf %11, %24 : vector<8x16x16xf32>
    %c0_4 = arith.constant 0 : index
    %c0_5 = arith.constant 0 : index
    %c0_6 = arith.constant 0 : index
    %26 = vector.load %arg2[%c0_4, %c0_5, %c0_6] : memref<8x16x16xf32, #tpu.memory_space<vmem>>, vector<8x16x16xf32>
    tpu.vector_store %arg2[%c0_4, %c0_5, %c0_6], %25 {strides = array<i32>} : memref<8x16x16xf32, #tpu.memory_space<vmem>>, vector<8x16x16xf32>,
    %27 = arith.mulf %18, %24 : vector<8x16x16xf32>
    %c0_7 = arith.constant 0 : index
    %c0_8 = arith.constant 0 : index
    %c0_9 = arith.constant 0 : index
    %28 = vector.load %arg3[%c0_7, %c0_8, %c0_9] : memref<8x16x16xf32, #tpu.memory_space<vmem>>, vector<8x16x16xf32>
    tpu.vector_store %arg3[%c0_7, %c0_8, %c0_9], %27 {strides = array<i32>} : memref<8x16x16xf32, #tpu.memory_space<vmem>>, vector<8x16x16xf32>,
    return
  }
  func.func @transform_0(%arg0: i32) -> (i32, i32, i32) {
    %c0_i32 = arith.constant 0 : i32
    %c0_i32_0 = arith.constant 0 : i32
    %c0_i32_1 = arith.constant 0 : i32
    return %arg0, %c0_i32, %c0_i32_0 : i32, i32, i32
  }
  func.func @transform_1(%arg0: i32) -> (i32, i32, i32) {
    %c0_i32 = arith.constant 0 : i32
    %c0_i32_0 = arith.constant 0 : i32
    %c0_i32_1 = arith.constant 0 : i32
    return %arg0, %c0_i32, %c0_i32_0 : i32, i32, i32
  }
  func.func @transform_2(%arg0: i32) -> (i32, i32, i32) {
    %c0_i32 = arith.constant 0 : i32
    %c0_i32_0 = arith.constant 0 : i32
    %c0_i32_1 = arith.constant 0 : i32
    return %arg0, %c0_i32, %c0_i32_0 : i32, i32, i32
  }
}

</mosaic_0001>

<llo_original>
// kernel: tpu_custom_call.1
$region0: #{tpu_custom_call.1}
  #allocation0 [shape = 'u32[]', space=smem, size = 0x4, offset = 0x4, fixed_abs, tag = 'smem constant byte address 0x4 - core index']
  #allocation1 [shape = 'u32[144,128]{1,0:T(1,128)}', space=vmem, size = 0x12000, scoped, tag = 'internal scratch']
  %s0 = inlined_call_operand.vmem [shape: f32[8,18,18], index: 0, kind: input, shape index: {}]
  %s1 = inlined_call_operand.hbm [shape: f32[8,16,16], index: 1, kind: output, shape index: {0}]
  %s2 = inlined_call_operand.hbm [shape: f32[8,16,16], index: 2, kind: output, shape index: {1}]
  %3 = xla_tuple %s1, %s2
  %s4 = sld [smem:[#allocation0]]
  $region22: #{tpu_custom_call.1} parent=0
    _
  %s6 = ssub.s32 1, %s4
  %s7 = scalar_select 0, %s6, %s4
  $region1: #{tpu_custom_call.1} parent=0
    #allocation2 [shape = 'u8[65536]{0}', space=vmem, size = 0x10000, scoped, tag = 'output window, operand 0, single buffered']
    #allocation3 [shape = 's32[1]{0}', space=sflag, size = 0x4, scoped, tag = 'scoped memory for tpu_custom_call.1']
    #allocation4 [shape = 'u8[65536]{0}', space=vmem, size = 0x10000, scoped, tag = 'output window, operand 1, single buffered']
    #allocation5 [shape = 's32[1]{0}', space=sflag, size = 0x4, scoped, tag = 'scoped memory for tpu_custom_call.1']
    %8 = vsyncpa [#allocation3], 0
    %9 = vsyncpa [#allocation5], 0
    // Predicated region
    $region2: #{tpu_custom_call.1} parent=1 // pred_check
      _
    $region3: #{tpu_custom_call.1} parent=1 // pred_check_branch
      %11 = sbr.rel (0) target = $region5
    $region4: #{tpu_custom_call.1} parent=1 // pred_region
      _
    $region5: #{tpu_custom_call.1} parent=1 // pred_fallthru
      _
    %v12 = vld [vmem:[%s0] sm:$0xff]
    %v13 = vld [vmem:[%s0 + $0x8] sm:$0xff]
    %v14 = vld [vmem:[%s0 + $0x10] sm:$0x3]
    %v15 = vld [vmem:[%s0 + $0x18] sm:$0xff]
    %v16 = vld [vmem:[%s0 + $0x20] sm:$0xff]
    %v17 = vld [vmem:[%s0 + $0x28] sm:$0x3]
    %v18 = vld [vmem:[%s0 + $0x30] sm:$0xff]
    %v19 = vld [vmem:[%s0 + $0x38] sm:$0xff]
    %v20 = vld [vmem:[%s0 + $0x40] sm:$0x3]
    %v21 = vld [vmem:[%s0 + $0x48] sm:$0xff]
    %v22 = vld [vmem:[%s0 + $0x50] sm:$0xff]
    %v23 = vld [vmem:[%s0 + $0x58] sm:$0x3]
    %v24 = vld [vmem:[%s0 + $0x60] sm:$0xff]
    %v25 = vld [vmem:[%s0 + $0x68] sm:$0xff]
    %v26 = vld [vmem:[%s0 + $0x70] sm:$0x3]
    %v27 = vld [vmem:[%s0 + $0x78] sm:$0xff]
    %v28 = vld [vmem:[%s0 + $0x80] sm:$0xff]
    %v29 = vld [vmem:[%s0 + $0x88] sm:$0x3]
    %v30 = vld [vmem:[%s0 + $0x90] sm:$0xff]
    %v31 = vld [vmem:[%s0 + $0x98] sm:$0xff]
    %v32 = vld [vmem:[%s0 + $0xa0] sm:$0x3]
    %v33 = vld [vmem:[%s0 + $0xa8] sm:$0xff]
    %v34 = vld [vmem:[%s0 + $0xb0] sm:$0xff]
    %v35 = vld [vmem:[%s0 + $0xb8] sm:$0x3]
    %v36 = vmul.f32 %v12, 2.0
    %v37 = vmul.f32 %v13, 2.0
    %v38 = vmul.f32 %v14, 2.0
    %v39 = vmul.f32 %v15, 2.0
    %v40 = vmul.f32 %v16, 2.0
    %v41 = vmul.f32 %v17, 2.0
    %v42 = vmul.f32 %v18, 2.0
    %v43 = vmul.f32 %v19, 2.0
    %v44 = vmul.f32 %v20, 2.0
    %v45 = vmul.f32 %v21, 2.0
    %v46 = vmul.f32 %v22, 2.0
    %v47 = vmul.f32 %v23, 2.0
    %v48 = vmul.f32 %v24, 2.0
    %v49 = vmul.f32 %v25, 2.0
    %v50 = vmul.f32 %v26, 2.0
    %v51 = vmul.f32 %v27, 2.0
    %v52 = vmul.f32 %v28, 2.0
    %v53 = vmul.f32 %v29, 2.0
    %v54 = vmul.f32 %v30, 2.0
    %v55 = vmul.f32 %v31, 2.0
    %v56 = vmul.f32 %v32, 2.0
    %v57 = vmul.f32 %v33, 2.0
    %v58 = vmul.f32 %v34, 2.0
    %v59 = vmul.f32 %v35, 2.0
    %vm84 = vcmask 1046528
    %v85 = vrot.slane %v36, 1
    %v86 = vrot.slane %v37, 1
    %v87 = vsel %vm84, %v85, %v86
    %v88 = vrot.slane %v38, 1
    %v89 = vsel %vm84, %v86, %v88
    %v90 = vrot.slane %v39, 1
    %v91 = vrot.slane %v40, 1
    %v92 = vsel %vm84, %v90, %v91
    %v93 = vrot.slane %v41, 1
    %v94 = vsel %vm84, %v91, %v93
    %v95 = vrot.slane %v42, 1
    %v96 = vrot.slane %v43, 1
    %v97 = vsel %vm84, %v95, %v96
    %v98 = vrot.slane %v44, 1
    %v99 = vsel %vm84, %v96, %v98
    %v100 = vrot.slane %v45, 1
    %v101 = vrot.slane %v46, 1
    %v102 = vsel %vm84, %v100, %v101
    %v103 = vrot.slane %v47, 1
    %v104 = vsel %vm84, %v101, %v103
    %v105 = vrot.slane %v48, 1
    %v106 = vrot.slane %v49, 1
    %v107 = vsel %vm84, %v105, %v106
    %v108 = vrot.slane %v50, 1
    %v109 = vsel %vm84, %v106, %v108
    %v110 = vrot.slane %v51, 1
    %v111 = vrot.slane %v52, 1
    %v112 = vsel %vm84, %v110, %v111
    %v113 = vrot.slane %v53, 1
    %v114 = vsel %vm84, %v111, %v113
    %v115 = vrot.slane %v54, 1
    %v116 = vrot.slane %v55, 1
    %v117 = vsel %vm84, %v115, %v116
    %v118 = vrot.slane %v56, 1
    %v119 = vsel %vm84, %v116, %v118
    %v120 = vrot.slane %v57, 1
    %v121 = vrot.slane %v58, 1
    %v122 = vsel %vm84, %v120, %v121
    %v123 = vrot.slane %v59, 1
    %v124 = vsel %vm84, %v121, %v123
    %v141 = vadd.f32 %v12, %v87
    %v142 = vadd.f32 %v13, %v89
    %v143 = vadd.f32 %v15, %v92
    %v144 = vadd.f32 %v16, %v94
    %v145 = vadd.f32 %v18, %v97
    %v146 = vadd.f32 %v19, %v99
    %v147 = vadd.f32 %v21, %v102
    %v148 = vadd.f32 %v22, %v104
    %v149 = vadd.f32 %v24, %v107
    %v150 = vadd.f32 %v25, %v109
    %v151 = vadd.f32 %v27, %v112
    %v152 = vadd.f32 %v28, %v114
    %v153 = vadd.f32 %v30, %v117
    %v154 = vadd.f32 %v31, %v119
    %v155 = vadd.f32 %v33, %v122
    %v156 = vadd.f32 %v34, %v124
    %vm181 = vcmask 1045504
    %v182 = vrot.slane %v12, 2
    %v183 = vrot.slane %v13, 2
    %v184 = vsel %vm181, %v182, %v183
    %v185 = vrot.slane %v14, 2
    %v186 = vsel %vm181, %v183, %v185
    %v187 = vrot.slane %v15, 2
    %v188 = vrot.slane %v16, 2
    %v189 = vsel %vm181, %v187, %v188
    %v190 = vrot.slane %v17, 2
    %v191 = vsel %vm181, %v188, %v190
    %v192 = vrot.slane %v18, 2
    %v193 = vrot.slane %v19, 2
    %v194 = vsel %vm181, %v192, %v193
    %v195 = vrot.slane %v20, 2
    %v196 = vsel %vm181, %v193, %v195
    %v197 = vrot.slane %v21, 2
    %v198 = vrot.slane %v22, 2
    %v199 = vsel %vm181, %v197, %v198
    %v200 = vrot.slane %v23, 2
    %v201 = vsel %vm181, %v198, %v200
    %v202 = vrot.slane %v24, 2
    %v203 = vrot.slane %v25, 2
    %v204 = vsel %vm181, %v202, %v203
    %v205 = vrot.slane %v26, 2
    %v206 = vsel %vm181, %v203, %v205
    %v207 = vrot.slane %v27, 2
    %v208 = vrot.slane %v28, 2
    %v209 = vsel %vm181, %v207, %v208
    %v210 = vrot.slane %v29, 2
    %v211 = vsel %vm181, %v208, %v210
    %v212 = vrot.slane %v30, 2
    %v213 = vrot.slane %v31, 2
    %v214 = vsel %vm181, %v212, %v213
    %v215 = vrot.slane %v32, 2
    %v216 = vsel %vm181, %v213, %v215
    %v217 = vrot.slane %v33, 2
    %v218 = vrot.slane %v34, 2
    %v219 = vsel %vm181, %v217, %v218
    %v220 = vrot.slane %v35, 2
    %v221 = vsel %vm181, %v218, %v220
    %v238 = vadd.f32 %v141, %v184
    %v239 = vadd.f32 %v142, %v186
    %v240 = vadd.f32 %v143, %v189
    %v241 = vadd.f32 %v144, %v191
    %v242 = vadd.f32 %v145, %v194
    %v243 = vadd.f32 %v146, %v196
    %v244 = vadd.f32 %v147, %v199
    %v245 = vadd.f32 %v148, %v201
    %v246 = vadd.f32 %v149, %v204
    %v247 = vadd.f32 %v150, %v206
    %v248 = vadd.f32 %v151, %v209
    %v249 = vadd.f32 %v152, %v211
    %v250 = vadd.f32 %v153, %v214
    %v251 = vadd.f32 %v154, %v216
    %v252 = vadd.f32 %v155, %v219
    %v253 = vadd.f32 %v156, %v221
    %vm254 = vcmask 1041408
    %v255 = vrot.slane %v12, 6
    %v256 = vrot.slane %v13, 6
    %v257 = vsel %vm254, %v255, %v256
    %v258 = vrot.slane %v15, 6
    %v259 = vrot.slane %v16, 6
    %v260 = vsel %vm254, %v258, %v259
    %v261 = vrot.slane %v18, 6
    %v262 = vrot.slane %v19, 6
    %v263 = vsel %vm254, %v261, %v262
    %v264 = vrot.slane %v21, 6
    %v265 = vrot.slane %v22, 6
    %v266 = vsel %vm254, %v264, %v265
    %v267 = vrot.slane %v24, 6
    %v268 = vrot.slane %v25, 6
    %v269 = vsel %vm254, %v267, %v268
    %v270 = vrot.slane %v27, 6
    %v271 = vrot.slane %v28, 6
    %v272 = vsel %vm254, %v270, %v271
    %v273 = vrot.slane %v30, 6
    %v274 = vrot.slane %v31, 6
    %v275 = vsel %vm254, %v273, %v274
    %v276 = vrot.slane %v33, 6
    %v277 = vrot.slane %v34, 6
    %v278 = vsel %vm254, %v276, %v277
    %v303 = vsub.f32 %v12, %v255
    %v304 = vsub.f32 %v13, %v257
    %v305 = vsub.f32 %v14, %v256
    %v306 = vsub.f32 %v15, %v258
    %v307 = vsub.f32 %v16, %v260
    %v308 = vsub.f32 %v17, %v259
    %v309 = vsub.f32 %v18, %v261
    %v310 = vsub.f32 %v19, %v263
    %v311 = vsub.f32 %v20, %v262
    %v312 = vsub.f32 %v21, %v264
    %v313 = vsub.f32 %v22, %v266
    %v314 = vsub.f32 %v23, %v265
    %v315 = vsub.f32 %v24, %v267
    %v316 = vsub.f32 %v25, %v269
    %v317 = vsub.f32 %v26, %v268
    %v318 = vsub.f32 %v27, %v270
    %v319 = vsub.f32 %v28, %v272
    %v320 = vsub.f32 %v29, %v271
    %v321 = vsub.f32 %v30, %v273
    %v322 = vsub.f32 %v31, %v275
    %v323 = vsub.f32 %v32, %v274
    %v324 = vsub.f32 %v33, %v276
    %v325 = vsub.f32 %v34, %v278
    %v326 = vsub.f32 %v35, %v277
    %343 = vrot.lane.b32.xlu0 %v238, 2
    %v344 = vpop.permute.xlu0 %343
    %345 = vrot.lane.b32.xlu0 %v239, 2
    %v346 = vpop.permute.xlu0 %345
    %347 = vrot.lane.b32.xlu0 %v240, 2
    %v348 = vpop.permute.xlu0 %347
    %349 = vrot.lane.b32.xlu0 %v241, 2
    %v350 = vpop.permute.xlu0 %349
    %351 = vrot.lane.b32.xlu0 %v242, 2
    %v352 = vpop.permute.xlu0 %351
    %353 = vrot.lane.b32.xlu0 %v243, 2
    %v354 = vpop.permute.xlu0 %353
    %355 = vrot.lane.b32.xlu0 %v244, 2
    %v356 = vpop.permute.xlu0 %355
    %357 = vrot.lane.b32.xlu0 %v245, 2
    %v358 = vpop.permute.xlu0 %357
    %359 = vrot.lane.b32.xlu0 %v246, 2
    %v360 = vpop.permute.xlu0 %359
    %361 = vrot.lane.b32.xlu0 %v247, 2
    %v362 = vpop.permute.xlu0 %361
    %363 = vrot.lane.b32.xlu0 %v248, 2
    %v364 = vpop.permute.xlu0 %363
    %365 = vrot.lane.b32.xlu0 %v249, 2
    %v366 = vpop.permute.xlu0 %365
    %367 = vrot.lane.b32.xlu0 %v250, 2
    %v368 = vpop.permute.xlu0 %367
    %369 = vrot.lane.b32.xlu0 %v251, 2
    %v370 = vpop.permute.xlu0 %369
    %371 = vrot.lane.b32.xlu0 %v252, 2
    %v372 = vpop.permute.xlu0 %371
    %373 = vrot.lane.b32.xlu0 %v253, 2
    %v374 = vpop.permute.xlu0 %373
    %v391 = vsub.f32 %v238, %v344
    %v392 = vsub.f32 %v239, %v346
    %v393 = vsub.f32 %v240, %v348
    %v394 = vsub.f32 %v241, %v350
    %v395 = vsub.f32 %v242, %v352
    %v396 = vsub.f32 %v243, %v354
    %v397 = vsub.f32 %v244, %v356
    %v398 = vsub.f32 %v245, %v358
    %v399 = vsub.f32 %v246, %v360
    %v400 = vsub.f32 %v247, %v362
    %v401 = vsub.f32 %v248, %v364
    %v402 = vsub.f32 %v249, %v366
    %v403 = vsub.f32 %v250, %v368
    %v404 = vsub.f32 %v251, %v370
    %v405 = vsub.f32 %v252, %v372
    %v406 = vsub.f32 %v253, %v374
    %v407 = vmul.f32 %v303, 2.0
    %v408 = vmul.f32 %v304, 2.0
    %v409 = vmul.f32 %v305, 2.0
    %v410 = vmul.f32 %v306, 2.0
    %v411 = vmul.f32 %v307, 2.0
    %v412 = vmul.f32 %v308, 2.0
    %v413 = vmul.f32 %v309, 2.0
    %v414 = vmul.f32 %v310, 2.0
    %v415 = vmul.f32 %v311, 2.0
    %v416 = vmul.f32 %v312, 2.0
    %v417 = vmul.f32 %v313, 2.0
    %v418 = vmul.f32 %v314, 2.0
    %v419 = vmul.f32 %v315, 2.0
    %v420 = vmul.f32 %v316, 2.0
    %v421 = vmul.f32 %v317, 2.0
    %v422 = vmul.f32 %v318, 2.0
    %v423 = vmul.f32 %v319, 2.0
    %v424 = vmul.f32 %v320, 2.0
    %v425 = vmul.f32 %v321, 2.0
    %v426 = vmul.f32 %v322, 2.0
    %v427 = vmul.f32 %v323, 2.0
    %v428 = vmul.f32 %v324, 2.0
    %v429 = vmul.f32 %v325, 2.0
    %v430 = vmul.f32 %v326, 2.0
    %455 = vrot.lane.b32.xlu0 %v407, 127
    %v456 = vpop.permute.xlu0 %455
    %457 = vrot.lane.b32.xlu0 %v408, 127
    %v458 = vpop.permute.xlu0 %457
    %459 = vrot.lane.b32.xlu0 %v409, 127
    %v460 = vpop.permute.xlu0 %459
    %461 = vrot.lane.b32.xlu0 %v410, 127
    %v462 = vpop.permute.xlu0 %461
    %463 = vrot.lane.b32.xlu0 %v411, 127
    %v464 = vpop.permute.xlu0 %463
    %465 = vrot.lane.b32.xlu0 %v412, 127
    %v466 = vpop.permute.xlu0 %465
    %467 = vrot.lane.b32.xlu0 %v413, 127
    %v468 = vpop.permute.xlu0 %467
    %469 = vrot.lane.b32.xlu0 %v414, 127
    %v470 = vpop.permute.xlu0 %469
    %471 = vrot.lane.b32.xlu0 %v415, 127
    %v472 = vpop.permute.xlu0 %471
    %473 = vrot.lane.b32.xlu0 %v416, 127
    %v474 = vpop.permute.xlu0 %473
    %475 = vrot.lane.b32.xlu0 %v417, 127
    %v476 = vpop.permute.xlu0 %475
    %477 = vrot.lane.b32.xlu0 %v418, 127
    %v478 = vpop.permute.xlu0 %477
    %479 = vrot.lane.b32.xlu0 %v419, 127
    %v480 = vpop.permute.xlu0 %479
    %481 = vrot.lane.b32.xlu0 %v420, 127
    %v482 = vpop.permute.xlu0 %481
    %483 = vrot.lane.b32.xlu0 %v421, 127
    %v484 = vpop.permute.xlu0 %483
    %485 = vrot.lane.b32.xlu0 %v422, 127
    %v486 = vpop.permute.xlu0 %485
    %487 = vrot.lane.b32.xlu0 %v423, 127
    %v488 = vpop.permute.xlu0 %487
    %489 = vrot.lane.b32.xlu0 %v424, 127
    %v490 = vpop.permute.xlu0 %489
    %491 = vrot.lane.b32.xlu0 %v425, 127
    %v492 = vpop.permute.xlu0 %491
    %493 = vrot.lane.b32.xlu0 %v426, 127
    %v494 = vpop.permute.xlu0 %493
    %495 = vrot.lane.b32.xlu0 %v427, 127
    %v496 = vpop.permute.xlu0 %495
    %497 = vrot.lane.b32.xlu0 %v428, 127
    %v498 = vpop.permute.xlu0 %497
    %499 = vrot.lane.b32.xlu0 %v429, 127
    %v500 = vpop.permute.xlu0 %499
    %501 = vrot.lane.b32.xlu0 %v430, 127
    %v502 = vpop.permute.xlu0 %501
    %v527 = vadd.f32 %v303, %v456
    %v528 = vadd.f32 %v304, %v458
    %v529 = vadd.f32 %v305, %v460
    %v530 = vadd.f32 %v306, %v462
    %v531 = vadd.f32 %v307, %v464
    %v532 = vadd.f32 %v308, %v466
    %v533 = vadd.f32 %v309, %v468
    %v534 = vadd.f32 %v310, %v470
    %v535 = vadd.f32 %v311, %v472
    %v536 = vadd.f32 %v312, %v474
    %v537 = vadd.f32 %v313, %v476
    %v538 = vadd.f32 %v314, %v478
    %v539 = vadd.f32 %v315, %v480
    %v540 = vadd.f32 %v316, %v482
    %v541 = vadd.f32 %v317, %v484
    %v542 = vadd.f32 %v318, %v486
    %v543 = vadd.f32 %v319, %v488
    %v544 = vadd.f32 %v320, %v490
    %v545 = vadd.f32 %v321, %v492
    %v546 = vadd.f32 %v322, %v494
    %v547 = vadd.f32 %v323, %v496
    %v548 = vadd.f32 %v324, %v498
    %v549 = vadd.f32 %v325, %v500
    %v550 = vadd.f32 %v326, %v502
    %575 = vrot.lane.b32.xlu0 %v303, 126
    %v576 = vpop.permute.xlu0 %575
    %577 = vrot.lane.b32.xlu0 %v304, 126
    %v578 = vpop.permute.xlu0 %577
    %579 = vrot.lane.b32.xlu0 %v305, 126
    %v580 = vpop.permute.xlu0 %579
    %581 = vrot.lane.b32.xlu0 %v306, 126
    %v582 = vpop.permute.xlu0 %581
    %583 = vrot.lane.b32.xlu0 %v307, 126
    %v584 = vpop.permute.xlu0 %583
    %585 = vrot.lane.b32.xlu0 %v308, 126
    %v586 = vpop.permute.xlu0 %585
    %587 = vrot.lane.b32.xlu0 %v309, 126
    %v588 = vpop.permute.xlu0 %587
    %589 = vrot.lane.b32.xlu0 %v310, 126
    %v590 = vpop.permute.xlu0 %589
    %591 = vrot.lane.b32.xlu0 %v311, 126
    %v592 = vpop.permute.xlu0 %591
    %593 = vrot.lane.b32.xlu0 %v312, 126
    %v594 = vpop.permute.xlu0 %593
    %595 = vrot.lane.b32.xlu0 %v313, 126
    %v596 = vpop.permute.xlu0 %595
    %597 = vrot.lane.b32.xlu0 %v314, 126
    %v598 = vpop.permute.xlu0 %597
    %599 = vrot.lane.b32.xlu0 %v315, 126
    %v600 = vpop.permute.xlu0 %599
    %601 = vrot.lane.b32.xlu0 %v316, 126
    %v602 = vpop.permute.xlu0 %601
    %603 = vrot.lane.b32.xlu0 %v317, 126
    %v604 = vpop.permute.xlu0 %603
    %605 = vrot.lane.b32.xlu0 %v318, 126
    %v606 = vpop.permute.xlu0 %605
    %607 = vrot.lane.b32.xlu0 %v319, 126
    %v608 = vpop.permute.xlu0 %607
    %609 = vrot.lane.b32.xlu0 %v320, 126
    %v610 = vpop.permute.xlu0 %609
    %611 = vrot.lane.b32.xlu0 %v321, 126
    %v612 = vpop.permute.xlu0 %611
    %613 = vrot.lane.b32.xlu0 %v322, 126
    %v614 = vpop.permute.xlu0 %613
    %615 = vrot.lane.b32.xlu0 %v323, 126
    %v616 = vpop.permute.xlu0 %615
    %617 = vrot.lane.b32.xlu0 %v324, 126
    %v618 = vpop.permute.xlu0 %617
    %619 = vrot.lane.b32.xlu0 %v325, 126
    %v620 = vpop.permute.xlu0 %619
    %621 = vrot.lane.b32.xlu0 %v326, 126
    %v622 = vpop.permute.xlu0 %621
    %v647 = vadd.f32 %v527, %v576
    %v648 = vadd.f32 %v528, %v578
    %v649 = vadd.f32 %v529, %v580
    %v650 = vadd.f32 %v530, %v582
    %v651 = vadd.f32 %v531, %v584
    %v652 = vadd.f32 %v532, %v586
    %v653 = vadd.f32 %v533, %v588
    %v654 = vadd.f32 %v534, %v590
    %v655 = vadd.f32 %v535, %v592
    %v656 = vadd.f32 %v536, %v594
    %v657 = vadd.f32 %v537, %v596
    %v658 = vadd.f32 %v538, %v598
    %v659 = vadd.f32 %v539, %v600
    %v660 = vadd.f32 %v540, %v602
    %v661 = vadd.f32 %v541, %v604
    %v662 = vadd.f32 %v542, %v606
    %v663 = vadd.f32 %v543, %v608
    %v664 = vadd.f32 %v544, %v610
    %v665 = vadd.f32 %v545, %v612
    %v666 = vadd.f32 %v546, %v614
    %v667 = vadd.f32 %v547, %v616
    %v668 = vadd.f32 %v548, %v618
    %v669 = vadd.f32 %v549, %v620
    %v670 = vadd.f32 %v550, %v622
    %v671 = vmul.f32 %v391, %v391
    %v672 = vmul.f32 %v392, %v392
    %v673 = vmul.f32 %v393, %v393
    %v674 = vmul.f32 %v394, %v394
    %v675 = vmul.f32 %v395, %v395
    %v676 = vmul.f32 %v396, %v396
    %v677 = vmul.f32 %v397, %v397
    %v678 = vmul.f32 %v398, %v398
    %v679 = vmul.f32 %v399, %v399
    %v680 = vmul.f32 %v400, %v400
    %v681 = vmul.f32 %v401, %v401
    %v682 = vmul.f32 %v402, %v402
    %v683 = vmul.f32 %v403, %v403
    %v684 = vmul.f32 %v404, %v404
    %v685 = vmul.f32 %v405, %v405
    %v686 = vmul.f32 %v406, %v406
    %v687 = vmul.f32 %v647, %v647
    %v688 = vmul.f32 %v648, %v648
    %v689 = vmul.f32 %v649, %v649
    %v690 = vmul.f32 %v650, %v650
    %v691 = vmul.f32 %v651, %v651
    %v692 = vmul.f32 %v652, %v652
    %v693 = vmul.f32 %v653, %v653
    %v694 = vmul.f32 %v654, %v654
    %v695 = vmul.f32 %v655, %v655
    %v696 = vmul.f32 %v656, %v656
    %v697 = vmul.f32 %v657, %v657
    %v698 = vmul.f32 %v658, %v658
    %v699 = vmul.f32 %v659, %v659
    %v700 = vmul.f32 %v660, %v660
    %v701 = vmul.f32 %v661, %v661
    %v702 = vmul.f32 %v662, %v662
    %v703 = vmul.f32 %v663, %v663
    %v704 = vmul.f32 %v664, %v664
    %v705 = vmul.f32 %v665, %v665
    %v706 = vmul.f32 %v666, %v666
    %v707 = vmul.f32 %v667, %v667
    %v708 = vmul.f32 %v668, %v668
    %v709 = vmul.f32 %v669, %v669
    %v710 = vmul.f32 %v670, %v670
    %v735 = vrot.slane %v687, 2
    %v736 = vrot.slane %v688, 2
    %v737 = vsel %vm181, %v735, %v736
    %v738 = vrot.slane %v689, 2
    %v739 = vsel %vm181, %v736, %v738
    %v740 = vrot.slane %v690, 2
    %v741 = vrot.slane %v691, 2
    %v742 = vsel %vm181, %v740, %v741
    %v743 = vrot.slane %v692, 2
    %v744 = vsel %vm181, %v741, %v743
    %v745 = vrot.slane %v693, 2
    %v746 = vrot.slane %v694, 2
    %v747 = vsel %vm181, %v745, %v746
    %v748 = vrot.slane %v695, 2
    %v749 = vsel %vm181, %v746, %v748
    %v750 = vrot.slane %v696, 2
    %v751 = vrot.slane %v697, 2
    %v752 = vsel %vm181, %v750, %v751
    %v753 = vrot.slane %v698, 2
    %v754 = vsel %vm181, %v751, %v753
    %v755 = vrot.slane %v699, 2
    %v756 = vrot.slane %v700, 2
    %v757 = vsel %vm181, %v755, %v756
    %v758 = vrot.slane %v701, 2
    %v759 = vsel %vm181, %v756, %v758
    %v760 = vrot.slane %v702, 2
    %v761 = vrot.slane %v703, 2
    %v762 = vsel %vm181, %v760, %v761
    %v763 = vrot.slane %v704, 2
    %v764 = vsel %vm181, %v761, %v763
    %v765 = vrot.slane %v705, 2
    %v766 = vrot.slane %v706, 2
    %v767 = vsel %vm181, %v765, %v766
    %v768 = vrot.slane %v707, 2
    %v769 = vsel %vm181, %v766, %v768
    %v770 = vrot.slane %v708, 2
    %v771 = vrot.slane %v709, 2
    %v772 = vsel %vm181, %v770, %v771
    %v773 = vrot.slane %v710, 2
    %v774 = vsel %vm181, %v771, %v773
    %775 = vrot.lane.b32.xlu0 %v737, 2
    %v776 = vpop.permute.xlu0 %775
    %777 = vrot.lane.b32.xlu0 %v739, 2
    %v778 = vpop.permute.xlu0 %777
    %779 = vrot.lane.b32.xlu0 %v742, 2
    %v780 = vpop.permute.xlu0 %779
    %781 = vrot.lane.b32.xlu0 %v744, 2
    %v782 = vpop.permute.xlu0 %781
    %783 = vrot.lane.b32.xlu0 %v747, 2
    %v784 = vpop.permute.xlu0 %783
    %785 = vrot.lane.b32.xlu0 %v749, 2
    %v786 = vpop.permute.xlu0 %785
    %787 = vrot.lane.b32.xlu0 %v752, 2
    %v788 = vpop.permute.xlu0 %787
    %789 = vrot.lane.b32.xlu0 %v754, 2
    %v790 = vpop.permute.xlu0 %789
    %791 = vrot.lane.b32.xlu0 %v757, 2
    %v792 = vpop.permute.xlu0 %791
    %793 = vrot.lane.b32.xlu0 %v759, 2
    %v794 = vpop.permute.xlu0 %793
    %795 = vrot.lane.b32.xlu0 %v762, 2
    %v796 = vpop.permute.xlu0 %795
    %797 = vrot.lane.b32.xlu0 %v764, 2
    %v798 = vpop.permute.xlu0 %797
    %799 = vrot.lane.b32.xlu0 %v767, 2
    %v800 = vpop.permute.xlu0 %799
    %801 = vrot.lane.b32.xlu0 %v769, 2
    %v802 = vpop.permute.xlu0 %801
    %803 = vrot.lane.b32.xlu0 %v772, 2
    %v804 = vpop.permute.xlu0 %803
    %805 = vrot.lane.b32.xlu0 %v774, 2
    %v806 = vpop.permute.xlu0 %805
    %v823 = vadd.f32 %v671, %v776
    %v824 = vadd.f32 %v672, %v778
    %v825 = vadd.f32 %v673, %v780
    %v826 = vadd.f32 %v674, %v782
    %v827 = vadd.f32 %v675, %v784
    %v828 = vadd.f32 %v676, %v786
    %v829 = vadd.f32 %v677, %v788
    %v830 = vadd.f32 %v678, %v790
    %v831 = vadd.f32 %v679, %v792
    %v832 = vadd.f32 %v680, %v794
    %v833 = vadd.f32 %v681, %v796
    %v834 = vadd.f32 %v682, %v798
    %v835 = vadd.f32 %v683, %v800
    %v836 = vadd.f32 %v684, %v802
    %v837 = vadd.f32 %v685, %v804
    %v838 = vadd.f32 %v686, %v806
    %v839 = vadd.f32 %v823, 1e-08
    %v840 = vadd.f32 %v824, 1e-08
    %v841 = vadd.f32 %v825, 1e-08
    %v842 = vadd.f32 %v826, 1e-08
    %v843 = vadd.f32 %v827, 1e-08
    %v844 = vadd.f32 %v828, 1e-08
    %v845 = vadd.f32 %v829, 1e-08
    %v846 = vadd.f32 %v830, 1e-08
    %v847 = vadd.f32 %v831, 1e-08
    %v848 = vadd.f32 %v832, 1e-08
    %v849 = vadd.f32 %v833, 1e-08
    %v850 = vadd.f32 %v834, 1e-08
    %v851 = vadd.f32 %v835, 1e-08
    %v852 = vadd.f32 %v836, 1e-08
    %v853 = vadd.f32 %v837, 1e-08
    %v854 = vadd.f32 %v838, 1e-08
    %v855 = vrsqrt.pop %v839
    %v856 = vrsqrt.pop %v840
    %v857 = vrsqrt.pop %v841
    %v858 = vrsqrt.pop %v842
    %v859 = vrsqrt.pop %v843
    %v860 = vrsqrt.pop %v844
    %v861 = vrsqrt.pop %v845
    %v862 = vrsqrt.pop %v846
    %v863 = vrsqrt.pop %v847
    %v864 = vrsqrt.pop %v848
    %v865 = vrsqrt.pop %v849
    %v866 = vrsqrt.pop %v850
    %v867 = vrsqrt.pop %v851
    %v868 = vrsqrt.pop %v852
    %v869 = vrsqrt.pop %v853
    %v870 = vrsqrt.pop %v854
    %v871 = vmul.f32 %v391, %v855
    %v872 = vmul.f32 %v392, %v856
    %v873 = vmul.f32 %v393, %v857
    %v874 = vmul.f32 %v394, %v858
    %v875 = vmul.f32 %v395, %v859
    %v876 = vmul.f32 %v396, %v860
    %v877 = vmul.f32 %v397, %v861
    %v878 = vmul.f32 %v398, %v862
    %v879 = vmul.f32 %v399, %v863
    %v880 = vmul.f32 %v400, %v864
    %v881 = vmul.f32 %v401, %v865
    %v882 = vmul.f32 %v402, %v866
    %v883 = vmul.f32 %v403, %v867
    %v884 = vmul.f32 %v404, %v868
    %v885 = vmul.f32 %v405, %v869
    %v886 = vmul.f32 %v406, %v870
    %903 = vrot.lane.b32.xlu0 %v871, 126
    %v904 = vpop.permute.xlu0 %903
    %905 = vrot.lane.b32.xlu0 %v872, 126
    %v906 = vpop.permute.xlu0 %905
    %907 = vrot.lane.b32.xlu0 %v873, 126
    %v908 = vpop.permute.xlu0 %907
    %909 = vrot.lane.b32.xlu0 %v874, 126
    %v910 = vpop.permute.xlu0 %909
    %911 = vrot.lane.b32.xlu0 %v875, 126
    %v912 = vpop.permute.xlu0 %911
    %913 = vrot.lane.b32.xlu0 %v876, 126
    %v914 = vpop.permute.xlu0 %913
    %915 = vrot.lane.b32.xlu0 %v877, 126
    %v916 = vpop.permute.xlu0 %915
    %917 = vrot.lane.b32.xlu0 %v878, 126
    %v918 = vpop.permute.xlu0 %917
    %919 = vrot.lane.b32.xlu0 %v879, 126
    %v920 = vpop.permute.xlu0 %919
    %921 = vrot.lane.b32.xlu0 %v880, 126
    %v922 = vpop.permute.xlu0 %921
    %923 = vrot.lane.b32.xlu0 %v881, 126
    %v924 = vpop.permute.xlu0 %923
    %925 = vrot.lane.b32.xlu0 %v882, 126
    %v926 = vpop.permute.xlu0 %925
    %927 = vrot.lane.b32.xlu0 %v883, 126
    %v928 = vpop.permute.xlu0 %927
    %929 = vrot.lane.b32.xlu0 %v884, 126
    %v930 = vpop.permute.xlu0 %929
    %931 = vrot.lane.b32.xlu0 %v885, 126
    %v932 = vpop.permute.xlu0 %931
    %933 = vrot.lane.b32.xlu0 %v886, 126
    %v934 = vpop.permute.xlu0 %933
    %vm951 = vcmask 130048
    %952 = vst.msk [vmem:[#allocation2] sm:$0xff] %vm951, %v904
    %953 = vst.msk [vmem:[#allocation2 + $0x8] sm:$0xff] %vm951, %v906
    %954 = vst.msk [vmem:[#allocation2 + $0x10] sm:$0xff] %vm951, %v908
    %955 = vst.msk [vmem:[#allocation2 + $0x18] sm:$0xff] %vm951, %v910
    %956 = vst.msk [vmem:[#allocation2 + $0x20] sm:$0xff] %vm951, %v912
    %957 = vst.msk [vmem:[#allocation2 + $0x28] sm:$0xff] %vm951, %v914
    %958 = vst.msk [vmem:[#allocation2 + $0x30] sm:$0xff] %vm951, %v916
    %959 = vst.msk [vmem:[#allocation2 + $0x38] sm:$0xff] %vm951, %v918
    %960 = vst.msk [vmem:[#allocation2 + $0x40] sm:$0xff] %vm951, %v920
    %961 = vst.msk [vmem:[#allocation2 + $0x48] sm:$0xff] %vm951, %v922
    %962 = vst.msk [vmem:[#allocation2 + $0x50] sm:$0xff] %vm951, %v924
    %963 = vst.msk [vmem:[#allocation2 + $0x58] sm:$0xff] %vm951, %v926
    %964 = vst.msk [vmem:[#allocation2 + $0x60] sm:$0xff] %vm951, %v928
    %965 = vst.msk [vmem:[#allocation2 + $0x68] sm:$0xff] %vm951, %v930
    %966 = vst.msk [vmem:[#allocation2 + $0x70] sm:$0xff] %vm951, %v932
    %967 = vst.msk [vmem:[#allocation2 + $0x78] sm:$0xff] %vm951, %v934
    %v984 = vrot.slane %v855, 6
    %v985 = vrot.slane %v856, 6
    %v986 = vsel %vm254, %v984, %v985
    %v987 = vrot.slane %v857, 6
    %v988 = vrot.slane %v858, 6
    %v989 = vsel %vm254, %v987, %v988
    %v990 = vrot.slane %v859, 6
    %v991 = vrot.slane %v860, 6
    %v992 = vsel %vm254, %v990, %v991
    %v993 = vrot.slane %v861, 6
    %v994 = vrot.slane %v862, 6
    %v995 = vsel %vm254, %v993, %v994
    %v996 = vrot.slane %v863, 6
    %v997 = vrot.slane %v864, 6
    %v998 = vsel %vm254, %v996, %v997
    %v999 = vrot.slane %v865, 6
    %v1000 = vrot.slane %v866, 6
    %v1001 = vsel %vm254, %v999, %v1000
    %v1002 = vrot.slane %v867, 6
    %v1003 = vrot.slane %v868, 6
    %v1004 = vsel %vm254, %v1002, %v1003
    %v1005 = vrot.slane %v869, 6
    %v1006 = vrot.slane %v870, 6
    %v1007 = vsel %vm254, %v1005, %v1006
    %1008 = vrot.lane.b32.xlu0 %v984, 126
    %v1009 = vpop.permute.xlu0 %1008
    %1010 = vrot.lane.b32.xlu0 %v986, 126
    %v1011 = vpop.permute.xlu0 %1010
    %1012 = vrot.lane.b32.xlu0 %v985, 126
    %v1013 = vpop.permute.xlu0 %1012
    %1014 = vrot.lane.b32.xlu0 %v987, 126
    %v1015 = vpop.permute.xlu0 %1014
    %1016 = vrot.lane.b32.xlu0 %v989, 126
    %v1017 = vpop.permute.xlu0 %1016
    %1018 = vrot.lane.b32.xlu0 %v988, 126
    %v1019 = vpop.permute.xlu0 %1018
    %1020 = vrot.lane.b32.xlu0 %v990, 126
    %v1021 = vpop.permute.xlu0 %1020
    %1022 = vrot.lane.b32.xlu0 %v992, 126
    %v1023 = vpop.permute.xlu0 %1022
    %1024 = vrot.lane.b32.xlu0 %v991, 126
    %v1025 = vpop.permute.xlu0 %1024
    %1026 = vrot.lane.b32.xlu0 %v993, 126
    %v1027 = vpop.permute.xlu0 %1026
    %1028 = vrot.lane.b32.xlu0 %v995, 126
    %v1029 = vpop.permute.xlu0 %1028
    %1030 = vrot.lane.b32.xlu0 %v994, 126
    %v1031 = vpop.permute.xlu0 %1030
    %1032 = vrot.lane.b32.xlu0 %v996, 126
    %v1033 = vpop.permute.xlu0 %1032
    %1034 = vrot.lane.b32.xlu0 %v998, 126
    %v1035 = vpop.permute.xlu0 %1034
    %1036 = vrot.lane.b32.xlu0 %v997, 126
    %v1037 = vpop.permute.xlu0 %1036
    %1038 = vrot.lane.b32.xlu0 %v999, 126
    %v1039 = vpop.permute.xlu0 %1038
    %1040 = vrot.lane.b32.xlu0 %v1001, 126
    %v1041 = vpop.permute.xlu0 %1040
    %1042 = vrot.lane.b32.xlu0 %v1000, 126
    %v1043 = vpop.permute.xlu0 %1042
    %1044 = vrot.lane.b32.xlu0 %v1002, 126
    %v1045 = vpop.permute.xlu0 %1044
    %1046 = vrot.lane.b32.xlu0 %v1004, 126
    %v1047 = vpop.permute.xlu0 %1046
    %1048 = vrot.lane.b32.xlu0 %v1003, 126
    %v1049 = vpop.permute.xlu0 %1048
    %1050 = vrot.lane.b32.xlu0 %v1005, 126
    %v1051 = vpop.permute.xlu0 %1050
    %1052 = vrot.lane.b32.xlu0 %v1007, 126
    %v1053 = vpop.permute.xlu0 %1052
    %1054 = vrot.lane.b32.xlu0 %v1006, 126
    %v1055 = vpop.permute.xlu0 %1054
    %v1080 = vmul.f32 %v647, %v1009
    %v1081 = vmul.f32 %v648, %v1011
    %v1082 = vmul.f32 %v649, %v1013
    %v1083 = vmul.f32 %v650, %v1015
    %v1084 = vmul.f32 %v651, %v1017
    %v1085 = vmul.f32 %v652, %v1019
    %v1086 = vmul.f32 %v653, %v1021
    %v1087 = vmul.f32 %v654, %v1023
    %v1088 = vmul.f32 %v655, %v1025
    %v1089 = vmul.f32 %v656, %v1027
    %v1090 = vmul.f32 %v657, %v1029
    %v1091 = vmul.f32 %v658, %v1031
    %v1092 = vmul.f32 %v659, %v1033
    %v1093 = vmul.f32 %v660, %v1035
    %v1094 = vmul.f32 %v661, %v1037
    %v1095 = vmul.f32 %v662, %v1039
    %v1096 = vmul.f32 %v663, %v1041
    %v1097 = vmul.f32 %v664, %v1043
    %v1098 = vmul.f32 %v665, %v1045
    %v1099 = vmul.f32 %v666, %v1047
    %v1100 = vmul.f32 %v667, %v1049
    %v1101 = vmul.f32 %v668, %v1051
    %v1102 = vmul.f32 %v669, %v1053
    %v1103 = vmul.f32 %v670, %v1055
    %vm1104 = vcmask 130050
    %1105 = vst.msk [vmem:[#allocation4 - $0x2] sm:$0xfc] %vm1104, %v1080
    %1106 = vst.msk [vmem:[#allocation4 + $0x6] sm:$0xff] %vm951, %v1081
    %vm1107 = vcmask 123904
    %1108 = vst.msk [vmem:[#allocation4 + $0xe] sm:$0x3] %vm1107, %v1082
    %1109 = vst.msk [vmem:[#allocation4 + $0xe] sm:$0xfc] %vm1104, %v1083
    %1110 = vst.msk [vmem:[#allocation4 + $0x16] sm:$0xff] %vm951, %v1084
    %1111 = vst.msk [vmem:[#allocation4 + $0x1e] sm:$0x3] %vm1107, %v1085
    %1112 = vst.msk [vmem:[#allocation4 + $0x1e] sm:$0xfc] %vm1104, %v1086
    %1113 = vst.msk [vmem:[#allocation4 + $0x26] sm:$0xff] %vm951, %v1087
    %1114 = vst.msk [vmem:[#allocation4 + $0x2e] sm:$0x3] %vm1107, %v1088
    %1115 = vst.msk [vmem:[#allocation4 + $0x2e] sm:$0xfc] %vm1104, %v1089
    %1116 = vst.msk [vmem:[#allocation4 + $0x36] sm:$0xff] %vm951, %v1090
    %1117 = vst.msk [vmem:[#allocation4 + $0x3e] sm:$0x3] %vm1107, %v1091
    %1118 = vst.msk [vmem:[#allocation4 + $0x3e] sm:$0xfc] %vm1104, %v1092
    %1119 = vst.msk [vmem:[#allocation4 + $0x46] sm:$0xff] %vm951, %v1093
    %1120 = vst.msk [vmem:[#allocation4 + $0x4e] sm:$0x3] %vm1107, %v1094
    %1121 = vst.msk [vmem:[#allocation4 + $0x4e] sm:$0xfc] %vm1104, %v1095
    %1122 = vst.msk [vmem:[#allocation4 + $0x56] sm:$0xff] %vm951, %v1096
    %1123 = vst.msk [vmem:[#allocation4 + $0x5e] sm:$0x3] %vm1107, %v1097
    %1124 = vst.msk [vmem:[#allocation4 + $0x5e] sm:$0xfc] %vm1104, %v1098
    %1125 = vst.msk [vmem:[#allocation4 + $0x66] sm:$0xff] %vm951, %v1099
    %1126 = vst.msk [vmem:[#allocation4 + $0x6e] sm:$0x3] %vm1107, %v1100
    %1127 = vst.msk [vmem:[#allocation4 + $0x6e] sm:$0xfc] %vm1104, %v1101
    %1128 = vst.msk [vmem:[#allocation4 + $0x76] sm:$0xff] %vm951, %v1102
    %1129 = vst.msk [vmem:[#allocation4 + $0x7e] sm:$0x3] %vm1107, %v1103
    // Predicated region
    $region6: #{tpu_custom_call.1} parent=1 // pred_check
      _
    $region7: #{tpu_custom_call.1} parent=1 // pred_check_branch
      %1131 = sbr.rel (0) target = $region9
    $region8: #{tpu_custom_call.1} parent=1 // pred_region
      %s1133 = ssub.s32 2048, 2048
      %1134 = vsyncadd [#allocation3], %s1133
      %s1135 = sshll.u32 [#allocation2], 4
      %s1136 = int_to_ptr.vmem [resolvable:$true] %s1135
      %1141 = dma.vmem_to_hbm [thread:$0]  %s1136, 2048, %s1, [#allocation3], 128, 128, 8
    $region9: #{tpu_custom_call.1} parent=1 // pred_fallthru
      _
    // Predicated region
    $region10: #{tpu_custom_call.1} parent=1 // pred_check
      _
    $region11: #{tpu_custom_call.1} parent=1 // pred_check_branch
      %1143 = sbr.rel (0) target = $region13
    $region12: #{tpu_custom_call.1} parent=1 // pred_region
      %s1145 = ssub.s32 2048, 2048
      %1146 = vsyncadd [#allocation5], %s1145
      %s1147 = sshll.u32 [#allocation4], 4
      %s1148 = int_to_ptr.vmem [resolvable:$true] %s1147
      %1153 = dma.vmem_to_hbm [thread:$0]  %s1148, 2048, %s2, [#allocation5], 128, 128, 8
    $region13: #{tpu_custom_call.1} parent=1 // pred_fallthru
      _
    // Predicated region
    $region14: #{tpu_custom_call.1} parent=1 // pred_check
      _
    $region15: #{tpu_custom_call.1} parent=1 // pred_check_branch
      %1155 = sbr.rel (0) target = $region17
    $region16: #{tpu_custom_call.1} parent=1 // pred_region
      %1156 = dma.done [#allocation3], 2048
    $region17: #{tpu_custom_call.1} parent=1 // pred_fallthru
      _
    // Predicated region
    $region18: #{tpu_custom_call.1} parent=1 // pred_check
      _
    $region19: #{tpu_custom_call.1} parent=1 // pred_check_branch
      %1158 = sbr.rel (0) target = $region21
    $region20: #{tpu_custom_call.1} parent=1 // pred_region
      %1159 = dma.done [#allocation5], 2048
    $region21: #{tpu_custom_call.1} parent=1 // pred_fallthru
      _
    %1160 = vsyncpa [#allocation3], 1
    %1161 = vsyncpa [#allocation5], 1

</llo_original>
